<compile_context>
chip_gen: v6e
topology: v6e:2x2x1
jax: 0.10.0
libtpu: 0.0.40
codegen_flags: <defaults>
</compile_context>

<pallas_src>
import functools

import jax
import jax.numpy as jnp
from jax.experimental import pallas as pl
from jax.experimental.pallas import tpu as pltpu

IGNORE_INDEX = 255


def _ce_kernel(feat_ref, label_ref, proto_ref, sum_ref, cnt_ref, *,
               hw, tile_n, nt, nt_per_split):
    # feat_ref:  (C, TN)  raw (un-normalized) features, pixels in lanes
    # label_ref: (1, TN)  int32 labels (255 == ignore)
    # proto_ref: (K, C)   transposed class prototypes
    # sum_ref:   (1, TN)  per-lane partial CE sums (resident across tile axis)
    # cnt_ref:   (1, TN)  per-lane partial valid-pixel counts
    p = pl.program_id(1)
    t = pl.program_id(2)
    ti = p * nt_per_split + t        # logical tile index (may overshoot nt-1)

    @pl.when(t == 0)
    def _():
        sum_ref[...] = jnp.zeros_like(sum_ref)
        cnt_ref[...] = jnp.zeros_like(cnt_ref)

    x = feat_ref[...]                                           # (C, TN), native dtype
    xf = x.astype(jnp.float32)
    ssq = jnp.sum(xf * xf, axis=0, keepdims=True)               # (1, TN)
    # F.normalize(p=2, dim=C) followed by /100: both are per-lane scales that
    # commute with the (linear) matmul -> fold them into one (1, TN) factor
    # applied to the (K, TN) logits instead of the (C, TN) features.
    inv_scale = jax.lax.rsqrt(jnp.maximum(ssq, 1e-24)) * 0.01   # (1, TN)

    raw = jnp.dot(proto_ref[...], x,
                  preferred_element_type=jnp.float32)           # (K, TN)
    logits = raw * inv_scale

    # numerically stable log-sum-exp over the (small, sublane) class axis
    m = jnp.max(logits, axis=0, keepdims=True)                  # (1, TN)
    lse = m + jnp.log(jnp.sum(jnp.exp(logits - m), axis=0, keepdims=True))

    labels = label_ref[...]                                     # (1, TN) int32
    k_iota = jax.lax.broadcasted_iota(jnp.int32, logits.shape, 0)
    label_logit = jnp.sum(jnp.where(k_iota == labels, logits, 0.0),
                          axis=0, keepdims=True)                # (1, TN)

    contrib = lse - label_logit                                 # per-pixel CE
    valid = labels != IGNORE_INDEX                              # (1, TN) bool

    # Keep the masking a SELECT (jnp.where), never an arithmetic multiply:
    # garbage tail lanes may hold inf/NaN that a multiply would propagate.
    @pl.when(ti < nt - 1)        # fully in-bounds tile: no tail mask needed
    def _():
        sum_ref[...] += jnp.where(valid, contrib, 0.0)
        cnt_ref[...] += valid.astype(jnp.float32)

    @pl.when(ti >= nt - 1)       # last (possibly partial) or clamped OOB tile
    def _():
        col = ti * tile_n + jax.lax.broadcasted_iota(jnp.int32, labels.shape, 1)
        v = valid & (col < hw)
        sum_ref[...] += jnp.where(v, contrib, 0.0)
        cnt_ref[...] += v.astype(jnp.float32)


def _vmem_capacity_bytes():
    try:
        return int(pltpu.get_tpu_info().vmem_capacity_bytes)
    except Exception:
        return 64 * 1024 * 1024      # conservative fallback (v7x-sized VMEM)


def _ce_sum_count(feat_bchw, mask_bhw, proto_t):
    """Cross-entropy(normalize(feat) @ proto / 100, mask) with ignore_index=255,
    returned as (sum_over_valid_pixels, num_valid_pixels)."""
    B, C, H, W = feat_bchw.shape
    HW = H * W
    K = proto_t.shape[0]

    feat = feat_bchw.reshape(B, C, HW)                    # pure reshape, no copy
    labels = mask_bhw.reshape(B, 1, HW).astype(jnp.int32)

    itemsize = jnp.dtype(feat.dtype).itemsize
    vmem_cap = _vmem_capacity_bytes()
    usable = int(vmem_cap * 0.70)
    # Live bytes per lane column: 2x double-buffered feature block (native
    # dtype) + ~1.5x f32-equivalent in-kernel intermediates over C, plus the
    # (K, TN) logits/exp temporaries and the small label/accumulator rows.
    bytes_per_col = C * (2 * itemsize + 6) + (2 * K + 16) * 4
    tile_n = usable // max(bytes_per_col, 1)
    tile_n = max(128, (tile_n // 128) * 128)              # lane-dense multiple of 128
    if HW <= tile_n:
        tile_n = HW                                       # full-dim block is always legal
    nt = pl.cdiv(HW, tile_n)

    # Split the tile axis into two "parallel" halves so both TensorCores of a
    # v7x megacore have work even when B == 1.  Tiles of the second half that
    # fall past nt are clamped in the index_map and fully masked in-kernel.
    n_split = 2 if nt >= 2 else 1
    nt_per_split = pl.cdiv(nt, n_split)

    def _blk_idx(p, t):
        return jnp.minimum(p * nt_per_split + t, nt - 1)

    kernel = functools.partial(_ce_kernel, hw=HW, tile_n=tile_n, nt=nt,
                               nt_per_split=nt_per_split)

    sum_out, cnt_out = pl.pallas_call(
        kernel,
        out_shape=(jax.ShapeDtypeStruct((B, n_split, 1, tile_n), jnp.float32),
                   jax.ShapeDtypeStruct((B, n_split, 1, tile_n), jnp.float32)),
        grid_spec=pltpu.PrefetchScalarGridSpec(
            num_scalar_prefetch=0,
            grid=(B, n_split, nt_per_split),
            in_specs=[
                pl.BlockSpec((None, C, tile_n),
                             lambda b, p, t: (b, 0, _blk_idx(p, t))),
                pl.BlockSpec((None, 1, tile_n),
                             lambda b, p, t: (b, 0, _blk_idx(p, t))),
                pl.BlockSpec((K, C), lambda b, p, t: (0, 0)),
            ],
            out_specs=[
                pl.BlockSpec((None, None, 1, tile_n),
                             lambda b, p, t: (b, p, 0, 0)),
                pl.BlockSpec((None, None, 1, tile_n),
                             lambda b, p, t: (b, p, 0, 0)),
            ],
        ),
        compiler_params=pltpu.CompilerParams(
            dimension_semantics=("parallel", "parallel", "arbitrary"),
            vmem_limit_bytes=int(vmem_cap * 0.85)),
        # TODO(synk): sweep pl.Buffered(3) on the feature BlockSpec once
        # per-generation VMEM headroom is confirmed (hides strided-DMA issue
        # latency for very large HW).
    )(feat, labels, proto_t)

    # tiny final reduction over (B, n_split, tile_n) partials in plain JAX
    return jnp.sum(sum_out), jnp.sum(cnt_out)


def pixel_cl_loss(semantic_prototype, src_feat, src_mask, tgt_feat, tgt_mask):
    """Matches PixelCLLoss.forward:
       semantic_prototype: (C, K), src/tgt_feat: (B, C, H, W), masks: (B, H, W).
    Features may be passed as bfloat16 for ~2x HBM-traffic reduction; the
    normalization math still runs in f32 inside the kernel."""
    proto_t = jnp.transpose(semantic_prototype)           # (K, C), tiny

    # TODO(synk): when Hs,Ws == Ht,Wt the two passes could be fused into one
    # pallas_call (stacked batch) to halve launch/pipeline warm-up overhead.
    s_sum, s_cnt = _ce_sum_count(src_feat, src_mask,
                                 proto_t.astype(src_feat.dtype))
    t_sum, t_cnt = _ce_sum_count(tgt_feat, tgt_mask,
                                 proto_t.astype(tgt_feat.dtype))
    # nn.CrossEntropyLoss(reduction="mean", ignore_index=255) == sum / n_valid
    # (an all-ignored domain yields NaN, same as PyTorch).
    return s_sum / s_cnt + t_sum / t_cnt


if __name__ == "__main__":
    B, C, H, W, K = 2, 32, 16, 16, 8  # small synthetic shapes

    key = jax.random.PRNGKey(0)
    k_proto, k_src, k_tgt, k_sm, k_tm, k_ign = jax.random.split(key, 6)

    semantic_prototype = jax.random.normal(k_proto, (C, K), dtype=jnp.float32)
    src_feat = jax.random.normal(k_src, (B, C, H, W), dtype=jnp.float32)
    tgt_feat = jax.random.normal(k_tgt, (B, C, H, W), dtype=jnp.float32)
    src_mask = jax.random.randint(k_sm, (B, H, W), 0, K, dtype=jnp.int32)
    tgt_mask = jax.random.randint(k_tm, (B, H, W), 0, K, dtype=jnp.int32)
    # sprinkle some ignored pixels (label 255) to exercise ignore_index
    ign = jax.random.bernoulli(k_ign, 0.1, (B, H, W))
    src_mask = jnp.where(ign, 255, src_mask)
    tgt_mask = jnp.where(ign, 255, tgt_mask)

    loss = pixel_cl_loss(semantic_prototype, src_feat, src_mask,
                         tgt_feat, tgt_mask)
    jax.block_until_ready(loss)
    print("KERNEL_OK")
</pallas_src>

<mosaic_0001>
module attributes {stable_mosaic.version = 11 : i64} {
  func.func @_ce_kernel(%arg0: i32, %arg1: i32, %arg2: i32, %arg3: memref<1x32x256xf32, #tpu.memory_space<vmem>>, %arg4: memref<1x1x256xi32, #tpu.memory_space<vmem>>, %arg5: memref<8x32xf32, #tpu.memory_space<vmem>>, %arg6: memref<1x1x1x256xf32, #tpu.memory_space<vmem>>, %arg7: memref<1x1x1x256xf32, #tpu.memory_space<vmem>>) attributes {dimension_semantics = [#tpu.dimension_semantics<parallel>, #tpu.dimension_semantics<parallel>, #tpu.dimension_semantics<arbitrary>], iteration_bounds = array<i64: 2, 1, 1>, scalar_prefetch = 0 : i64, scratch_operands = 0 : i64, tpu.core_type = #tpu.core_type<tc>, window_params = [{transform_indices = @transform_0, window_bounds = array<i64: 1, 32, 256>}, {transform_indices = @transform_1, window_bounds = array<i64: 1, 1, 256>}, {pipeline_mode = #tpu.pipeline_mode<synchronous>, transform_indices = @transform_2, window_bounds = array<i64: 8, 32>}, {transform_indices = @transform_3, window_bounds = array<i64: 1, 1, 1, 256>}, {transform_indices = @transform_4, window_bounds = array<i64: 1, 1, 1, 256>}]} {
    %c1_i32 = arith.constant 1 : i32
    %0 = arith.muli %arg1, %c1_i32 : i32
    %1 = arith.addi %0, %arg2 : i32
    %c0_i32 = arith.constant 0 : i32
    %2 = arith.cmpi eq, %arg2, %c0_i32 : i32
    %3 = arith.extui %2 : i1 to i32
    %c0_i32_0 = arith.constant 0 : i32
    %4 = arith.cmpi ne, %3, %c0_i32_0 : i32
    scf.if %4 {
      %cst_19 = arith.constant 0.000000e+00 : f32
      %46 = vector.broadcast %cst_19 : f32 to vector<1x256xf32>
      %c0_20 = arith.constant 0 : index
      %c0_21 = arith.constant 0 : index
      %c0_22 = arith.constant 0 : index
      %c0_23 = arith.constant 0 : index
      %47 = vector.load %arg6[%c0_20, %c0_21, %c0_22, %c0_23] : memref<1x1x1x256xf32, #tpu.memory_space<vmem>>, vector<1x1x1x256xf32>
      %48 = vector.shape_cast %47 : vector<1x1x1x256xf32> to vector<1x256xf32>
      %49 = vector.shape_cast %46 : vector<1x256xf32> to vector<1x1x1x256xf32>
      tpu.vector_store %arg6[%c0_20, %c0_21, %c0_22, %c0_23], %49 {strides = array<i32>} : memref<1x1x1x256xf32, #tpu.memory_space<vmem>>, vector<1x1x1x256xf32>,
      %cst_24 = arith.constant 0.000000e+00 : f32
      %50 = vector.broadcast %cst_24 : f32 to vector<1x256xf32>
      %c0_25 = arith.constant 0 : index
      %c0_26 = arith.constant 0 : index
      %c0_27 = arith.constant 0 : index
      %c0_28 = arith.constant 0 : index
      %51 = vector.load %arg7[%c0_25, %c0_26, %c0_27, %c0_28] : memref<1x1x1x256xf32, #tpu.memory_space<vmem>>, vector<1x1x1x256xf32>
      %52 = vector.shape_cast %51 : vector<1x1x1x256xf32> to vector<1x256xf32>
      %53 = vector.shape_cast %50 : vector<1x256xf32> to vector<1x1x1x256xf32>
      tpu.vector_store %arg7[%c0_25, %c0_26, %c0_27, %c0_28], %53 {strides = array<i32>} : memref<1x1x1x256xf32, #tpu.memory_space<vmem>>, vector<1x1x1x256xf32>,
    } else {
    }
    %c0 = arith.constant 0 : index
    %c0_1 = arith.constant 0 : index
    %c0_2 = arith.constant 0 : index
    %5 = vector.load %arg3[%c0, %c0_1, %c0_2] : memref<1x32x256xf32, #tpu.memory_space<vmem>>, vector<1x32x256xf32>
    %6 = vector.shape_cast %5 : vector<1x32x256xf32> to vector<32x256xf32>
    %7 = arith.mulf %6, %6 : vector<32x256xf32>
    %cst = arith.constant dense<0.000000e+00> : vector<256xf32>
    %8 = vector.multi_reduction <add>, %7, %cst [0] : vector<32x256xf32> to vector<256xf32>
    %9 = vector.shape_cast %8 : vector<256xf32> to vector<1x256xf32>
    %cst_3 = arith.constant 1.000000e-24 : f32
    %10 = vector.broadcast %cst_3 : f32 to vector<1x256xf32>
    %11 = arith.maximumf %9, %10 : vector<1x256xf32>
    %12 = math.rsqrt %11 : vector<1x256xf32>
    %cst_4 = arith.constant 0.00999999977 : f32
    %13 = vector.broadcast %cst_4 : f32 to vector<1x256xf32>
    %14 = arith.mulf %12, %13 : vector<1x256xf32>
    %c0_5 = arith.constant 0 : index
    %c0_6 = arith.constant 0 : index
    %15 = vector.load %arg5[%c0_5, %c0_6] : memref<8x32xf32, #tpu.memory_space<vmem>>, vector<8x32xf32>
    %cst_7 = arith.constant dense<0.000000e+00> : vector<8x256xf32>
    %16 = tpu.matmul %15, %6, %cst_7 {dimension_numbers = #tpu.dot_dimension_numbers<[1], [0], [0], [1], [0, 0, 1, 1], [], []>} : vector<8x32xf32>, vector<32x256xf32>, vector<8x256xf32> -> vector<8x256xf32>
    %17 = vector.broadcast %14 : vector<1x256xf32> to vector<8x256xf32>
    %18 = arith.mulf %16, %17 : vector<8x256xf32>
    %cst_8 = arith.constant dense<0xFF800000> : vector<256xf32>
    %19 = vector.multi_reduction <maximumf>, %18, %cst_8 [0] : vector<8x256xf32> to vector<256xf32>
    %20 = vector.shape_cast %19 : vector<256xf32> to vector<1x256xf32>
    %21 = vector.broadcast %20 : vector<1x256xf32> to vector<8x256xf32>
    %22 = arith.subf %18, %21 : vector<8x256xf32>
    %23 = math.exp %22 : vector<8x256xf32>
    %cst_9 = arith.constant dense<0.000000e+00> : vector<256xf32>
    %24 = vector.multi_reduction <add>, %23, %cst_9 [0] : vector<8x256xf32> to vector<256xf32>
    %25 = vector.shape_cast %24 : vector<256xf32> to vector<1x256xf32>
    %26 = math.log %25 : vector<1x256xf32>
    %27 = arith.addf %20, %26 : vector<1x256xf32>
    %c0_10 = arith.constant 0 : index
    %c0_11 = arith.constant 0 : index
    %c0_12 = arith.constant 0 : index
    %28 = vector.load %arg4[%c0_10, %c0_11, %c0_12] : memref<1x1x256xi32, #tpu.memory_space<vmem>>, vector<1x1x256xi32>
    %29 = vector.shape_cast %28 : vector<1x1x256xi32> to vector<1x256xi32>
    %30 = tpu.iota {dimensions = array<i32: 0>} : vector<8x256xi32>
    %31 = vector.broadcast %29 : vector<1x256xi32> to vector<8x256xi32>
    %32 = arith.cmpi eq, %30, %31 : vector<8x256xi32>
    %cst_13 = arith.constant 0.000000e+00 : f32
    %33 = vector.broadcast %cst_13 : f32 to vector<8x256xf32>
    %34 = arith.select %32, %18, %33 : vector<8x256xi1>, vector<8x256xf32>
    %cst_14 = arith.constant dense<0.000000e+00> : vector<256xf32>
    %35 = vector.multi_reduction <add>, %34, %cst_14 [0] : vector<8x256xf32> to vector<256xf32>
    %36 = vector.shape_cast %35 : vector<256xf32> to vector<1x256xf32>
    %37 = arith.subf %27, %36 : vector<1x256xf32>
    %c255_i32 = arith.constant 255 : i32
    %38 = vector.broadcast %c255_i32 : i32 to vector<1x256xi32>
    %39 = arith.cmpi ne, %29, %38 : vector<1x256xi32>
    %c0_i32_15 = arith.constant 0 : i32
    %40 = arith.cmpi slt, %1, %c0_i32_15 : i32
    %41 = arith.extui %40 : i1 to i32
    %c0_i32_16 = arith.constant 0 : i32
    %42 = arith.cmpi ne, %41, %c0_i32_16 : i32
    scf.if %42 {
      %c0_19 = arith.constant 0 : index
      %c0_20 = arith.constant 0 : index
      %c0_21 = arith.constant 0 : index
      %c0_22 = arith.constant 0 : index
      %46 = vector.load %arg6[%c0_19, %c0_20, %c0_21, %c0_22] : memref<1x1x1x256xf32, #tpu.memory_space<vmem>>, vector<1x1x1x256xf32>
      %47 = vector.shape_cast %46 : vector<1x1x1x256xf32> to vector<1x256xf32>
      %cst_23 = arith.constant 0.000000e+00 : f32
      %48 = vector.broadcast %cst_23 : f32 to vector<1x256xf32>
      %49 = arith.select %39, %37, %48 : vector<1x256xi1>, vector<1x256xf32>
      %50 = arith.addf %47, %49 : vector<1x256xf32>
      %c0_24 = arith.constant 0 : index
      %c0_25 = arith.constant 0 : index
      %c0_26 = arith.constant 0 : index
      %c0_27 = arith.constant 0 : index
      %51 = vector.load %arg6[%c0_24, %c0_25, %c0_26, %c0_27] : memref<1x1x1x256xf32, #tpu.memory_space<vmem>>, vector<1x1x1x256xf32>
      %52 = vector.shape_cast %51 : vector<1x1x1x256xf32> to vector<1x256xf32>
      %53 = vector.shape_cast %50 : vector<1x256xf32> to vector<1x1x1x256xf32>
      tpu.vector_store %arg6[%c0_24, %c0_25, %c0_26, %c0_27], %53 {strides = array<i32>} : memref<1x1x1x256xf32, #tpu.memory_space<vmem>>, vector<1x1x1x256xf32>,
      %c0_28 = arith.constant 0 : index
      %c0_29 = arith.constant 0 : index
      %c0_30 = arith.constant 0 : index
      %c0_31 = arith.constant 0 : index
      %54 = vector.load %arg7[%c0_28, %c0_29, %c0_30, %c0_31] : memref<1x1x1x256xf32, #tpu.memory_space<vmem>>, vector<1x1x1x256xf32>
      %55 = vector.shape_cast %54 : vector<1x1x1x256xf32> to vector<1x256xf32>
      %56 = arith.extui %39 : vector<1x256xi1> to vector<1x256xi32>
      %57 = arith.sitofp %56 : vector<1x256xi32> to vector<1x256xf32>
      %58 = arith.addf %55, %57 : vector<1x256xf32>
      %c0_32 = arith.constant 0 : index
      %c0_33 = arith.constant 0 : index
      %c0_34 = arith.constant 0 : index
      %c0_35 = arith.constant 0 : index
      %59 = vector.load %arg7[%c0_32, %c0_33, %c0_34, %c0_35] : memref<1x1x1x256xf32, #tpu.memory_space<vmem>>, vector<1x1x1x256xf32>
      %60 = vector.shape_cast %59 : vector<1x1x1x256xf32> to vector<1x256xf32>
      %61 = vector.shape_cast %58 : vector<1x256xf32> to vector<1x1x1x256xf32>
      tpu.vector_store %arg7[%c0_32, %c0_33, %c0_34, %c0_35], %61 {strides = array<i32>} : memref<1x1x1x256xf32, #tpu.memory_space<vmem>>, vector<1x1x1x256xf32>,
    } else {
    }
    %c0_i32_17 = arith.constant 0 : i32
    %43 = arith.cmpi sge, %1, %c0_i32_17 : i32
    %44 = arith.extui %43 : i1 to i32
    %c0_i32_18 = arith.constant 0 : i32
    %45 = arith.cmpi ne, %44, %c0_i32_18 : i32
    scf.if %45 {
      %c256_i32 = arith.constant 256 : i32
      %46 = arith.muli %1, %c256_i32 : i32
      %47 = tpu.iota {dimensions = array<i32: 1>} : vector<1x256xi32>
      %48 = vector.broadcast %46 : i32 to vector<1x256xi32>
      %49 = arith.addi %48, %47 : vector<1x256xi32>
      %c256_i32_19 = arith.constant 256 : i32
      %50 = vector.broadcast %c256_i32_19 : i32 to vector<1x256xi32>
      %51 = arith.cmpi slt, %49, %50 : vector<1x256xi32>
      %52 = arith.andi %39, %51 : vector<1x256xi1>
      %c0_20 = arith.constant 0 : index
      %c0_21 = arith.constant 0 : index
      %c0_22 = arith.constant 0 : index
      %c0_23 = arith.constant 0 : index
      %53 = vector.load %arg6[%c0_20, %c0_21, %c0_22, %c0_23] : memref<1x1x1x256xf32, #tpu.memory_space<vmem>>, vector<1x1x1x256xf32>
      %54 = vector.shape_cast %53 : vector<1x1x1x256xf32> to vector<1x256xf32>
      %cst_24 = arith.constant 0.000000e+00 : f32
      %55 = vector.broadcast %cst_24 : f32 to vector<1x256xf32>
      %56 = arith.select %52, %37, %55 : vector<1x256xi1>, vector<1x256xf32>
      %57 = arith.addf %54, %56 : vector<1x256xf32>
      %c0_25 = arith.constant 0 : index
      %c0_26 = arith.constant 0 : index
      %c0_27 = arith.constant 0 : index
      %c0_28 = arith.constant 0 : index
      %58 = vector.load %arg6[%c0_25, %c0_26, %c0_27, %c0_28] : memref<1x1x1x256xf32, #tpu.memory_space<vmem>>, vector<1x1x1x256xf32>
      %59 = vector.shape_cast %58 : vector<1x1x1x256xf32> to vector<1x256xf32>
      %60 = vector.shape_cast %57 : vector<1x256xf32> to vector<1x1x1x256xf32>
      tpu.vector_store %arg6[%c0_25, %c0_26, %c0_27, %c0_28], %60 {strides = array<i32>} : memref<1x1x1x256xf32, #tpu.memory_space<vmem>>, vector<1x1x1x256xf32>,
      %c0_29 = arith.constant 0 : index
      %c0_30 = arith.constant 0 : index
      %c0_31 = arith.constant 0 : index
      %c0_32 = arith.constant 0 : index
      %61 = vector.load %arg7[%c0_29, %c0_30, %c0_31, %c0_32] : memref<1x1x1x256xf32, #tpu.memory_space<vmem>>, vector<1x1x1x256xf32>
      %62 = vector.shape_cast %61 : vector<1x1x1x256xf32> to vector<1x256xf32>
      %63 = arith.extui %52 : vector<1x256xi1> to vector<1x256xi32>
      %64 = arith.sitofp %63 : vector<1x256xi32> to vector<1x256xf32>
      %65 = arith.addf %62, %64 : vector<1x256xf32>
      %c0_33 = arith.constant 0 : index
      %c0_34 = arith.constant 0 : index
      %c0_35 = arith.constant 0 : index
      %c0_36 = arith.constant 0 : index
      %66 = vector.load %arg7[%c0_33, %c0_34, %c0_35, %c0_36] : memref<1x1x1x256xf32, #tpu.memory_space<vmem>>, vector<1x1x1x256xf32>
      %67 = vector.shape_cast %66 : vector<1x1x1x256xf32> to vector<1x256xf32>
      %68 = vector.shape_cast %65 : vector<1x256xf32> to vector<1x1x1x256xf32>
      tpu.vector_store %arg7[%c0_33, %c0_34, %c0_35, %c0_36], %68 {strides = array<i32>} : memref<1x1x1x256xf32, #tpu.memory_space<vmem>>, vector<1x1x1x256xf32>,
    } else {
    }
    return
  }
  func.func @transform_0(%arg0: i32, %arg1: i32, %arg2: i32) -> (i32, i32, i32) {
    %c1_i32 = arith.constant 1 : i32
    %0 = arith.muli %arg1, %c1_i32 : i32
    %1 = arith.addi %0, %arg2 : i32
    %c0_i32 = arith.constant 0 : i32
    %2 = arith.minsi %1, %c0_i32 : i32
    %c0_i32_0 = arith.constant 0 : i32
    %c0_i32_1 = arith.constant 0 : i32
    return %arg0, %c0_i32_0, %2 : i32, i32, i32
  }
  func.func @transform_1(%arg0: i32, %arg1: i32, %arg2: i32) -> (i32, i32, i32) {
    %c1_i32 = arith.constant 1 : i32
    %0 = arith.muli %arg1, %c1_i32 : i32
    %1 = arith.addi %0, %arg2 : i32
    %c0_i32 = arith.constant 0 : i32
    %2 = arith.minsi %1, %c0_i32 : i32
    %c0_i32_0 = arith.constant 0 : i32
    %c0_i32_1 = arith.constant 0 : i32
    return %arg0, %c0_i32_0, %2 : i32, i32, i32
  }
  func.func @transform_2(%arg0: i32, %arg1: i32, %arg2: i32) -> (i32, i32) {
    %c0_i32 = arith.constant 0 : i32
    %c0_i32_0 = arith.constant 0 : i32
    %c0_i32_1 = arith.constant 0 : i32
    return %c0_i32, %c0_i32_0 : i32, i32
  }
  func.func @transform_3(%arg0: i32, %arg1: i32, %arg2: i32) -> (i32, i32, i32, i32) {
    %c0_i32 = arith.constant 0 : i32
    %c0_i32_0 = arith.constant 0 : i32
    %c0_i32_1 = arith.constant 0 : i32
    return %arg0, %arg1, %c0_i32, %c0_i32_0 : i32, i32, i32, i32
  }
  func.func @transform_4(%arg0: i32, %arg1: i32, %arg2: i32) -> (i32, i32, i32, i32) {
    %c0_i32 = arith.constant 0 : i32
    %c0_i32_0 = arith.constant 0 : i32
    %c0_i32_1 = arith.constant 0 : i32
    return %arg0, %arg1, %c0_i32, %c0_i32_0 : i32, i32, i32, i32
  }
}

</mosaic_0001>

<llo_original>
// kernel: tpu_custom_call.1
$region0: #{tpu_custom_call.1}
  #allocation0 [shape = 'u32[]', space=smem, size = 0x4, offset = 0x4, fixed_abs, tag = 'smem constant byte address 0x4 - core index']
  #allocation1 [shape = 'u32[144,128]{1,0:T(1,128)}', space=vmem, size = 0x12000, scoped, tag = 'internal scratch']
  %s0 = inlined_call_operand.hbm [shape: f32[2,32,256], index: 0, kind: input, shape index: {}]
  %s1 = inlined_call_operand.hbm [shape: s32[2,1,256], index: 1, kind: input, shape index: {}]
  %s2 = inlined_call_operand.hbm [shape: f32[8,32], index: 2, kind: input, shape index: {}]
  %s3 = inlined_call_operand.hbm [shape: f32[2,1,1,256], index: 3, kind: output, shape index: {0}]
  %s4 = inlined_call_operand.hbm [shape: f32[2,1,1,256], index: 4, kind: output, shape index: {1}]
  %5 = xla_tuple %s3, %s4
  %s6 = sld [smem:[#allocation0]]
  $region77: #{tpu_custom_call.1} parent=0
    _
  %s8 = ssub.s32 1, %s6
  %s9 = scalar_select 0, %s8, %s6
  $region1: #{tpu_custom_call.1} parent=0
    #allocation2 [shape = 'u8[65536]{0}', space=vmem, size = 0x10000, scoped, tag = 'input window, operand 0']
    #allocation3 [shape = 's32[2]{0}', space=sflag, size = 0x8, scoped, tag = 'scoped memory for tpu_custom_call.1']
    #allocation4 [shape = 's32[2]{0}', space=sflag, size = 0x8, scoped, tag = 'scoped memory for tpu_custom_call.1']
    #allocation5 [shape = 'u8[2048]{0}', space=vmem, size = 0x800, scoped, tag = 'input window, operand 1']
    #allocation6 [shape = 's32[2]{0}', space=sflag, size = 0x8, scoped, tag = 'scoped memory for tpu_custom_call.1']
    #allocation7 [shape = 'u8[4096]{0}', space=vmem, size = 0x1000, scoped, tag = 'input window, operand 2, single buffered']
    #allocation8 [shape = 'u8[2048]{0}', space=vmem, size = 0x800, scoped, tag = 'output window, operand 0']
    #allocation9 [shape = 'u8[2048]{0}', space=vmem, size = 0x800, scoped, tag = 'output window, operand 1']
    #allocation10 [shape = 's32[2]{0}', space=sflag, size = 0x8, scoped, tag = 'scoped memory for tpu_custom_call.1']
    %10 = vsyncpa [#allocation3], 0
    %s11 = scalar_lea.sflag [#allocation3], 1
    %12 = vsyncpa %s11, 0
    %13 = vsyncpa [#allocation6], 0
    %s14 = scalar_lea.sflag [#allocation6], 1
    %15 = vsyncpa %s14, 0
    %16 = vsyncpa [#allocation4], 0
    %s17 = scalar_lea.sflag [#allocation4], 1
    %18 = vsyncpa %s17, 0
    %19 = vsyncpa [#allocation10], 0
    %s20 = scalar_lea.sflag [#allocation10], 1
    %21 = vsyncpa %s20, 0
    loop: start=0, step=1, limit=4
    $region2: #{tpu_custom_call.1} parent=1 // loop_pre_header
      _
    $region3: #{tpu_custom_call.1} parent=1 // loop_header
      %s23 = sphi 0, %s27
      %p24 = scmp.ge.s32.totalorder %s23, 4
      %s30 = sphi 0, %s49
      %s31 = sphi 0, %s45
      %s32 = sphi 0, %s41
      %s33 = sphi 0, %s30
      %s34 = sphi 0, %s31
      %s35 = sphi 0, %s32
      %s36 = sphi 0, %s33
      %s37 = sphi 0, %s34
      %s38 = sphi 0, %s35
      %s60 = sphi 0, %s62
      %s63 = sphi 0, %s60
      %s64 = sphi 0, %s63
      %s80 = sphi 0, %s64
      %s94 = sphi 0, %s96
      %s97 = sphi 0, %s94
      %s98 = sphi 0, %s97
      %s114 = sphi 0, %s98
      %s118 = sphi 0, %s118
      %s120 = sphi 0, %s118
      %s121 = sphi 0, %s120
      %s135 = sphi 0, %s121
      %s143 = sphi 0, %s145
      %s146 = sphi 0, %s143
      %s147 = sphi 0, %s146
      %s163 = sphi 0, %s147
      %s171 = sphi 0, %s173
      %s174 = sphi 0, %s171
      %s175 = sphi 0, %s174
      %s191 = sphi 0, %s175
    $region4: #{tpu_custom_call.1} parent=1 // loop_header_branch
      %26 = sbr.rel (%p24) target = $region8
    $region5: #{tpu_custom_call.1} parent=1 // loop_body
      %s28 = ssub.s32 %s23, 1
      %s29 = ssub.s32 %s23, 2
      %s39 = sadd.s32 1, %s32
      %p40 = scmp.ge.s32.totalorder %s39, 1
      %s41 = scalar_select %p40, 0, %s39
      %s42 = sadd.s32 1, %s31
      %s43 = scalar_select %p40, %s42, %s31
      %p44 = scmp.ge.s32.totalorder %s43, 1
      %s45 = scalar_select %p44, 0, %s43
      %s46 = sadd.s32 1, %s30
      %s47 = scalar_select %p44, %s46, %s30
      %p48 = scmp.ge.s32.totalorder %s47, 2
      %s49 = scalar_select %p48, 0, %s47
      %s50 = sadd.s32 %s31, %s32
      %p51 = scmp.lt.s32.totalorder %s50, 0
      %s52 = scalar_select %p51, %s50, 0
      %s53 = sadd.s32 %s45, %s41
      %p54 = scmp.lt.s32.totalorder %s53, 0
      %s55 = scalar_select %p54, %s53, 0
      %s56 = ssub.s32 %s30, %s49
      %s57 = ssub.s32 %s52, %s55
      %s58 = sor.u32 %s56, %s57
      %p59 = scmp.eq.s32.totalorder %s58, 0
      %s61 = sadd.s32 %s60, 1
      %s62 = scalar_select %p59, %s60, %s61
      %p65 = pneg %p59
      %p66 = scmp.eq.s32.totalorder %s23, 1
      %p67 = por %p65, %p66
      %p68 = scmp.ne.s32.totalorder %s60, %s63
      %p69 = scmp.eq.s32.totalorder %s23, 0
      %p70 = por %p68, %p69
      %p71 = scmp.ne.s32.totalorder %s60, %s63
      %p72 = scmp.eq.s32.totalorder %s28, 1
      %p73 = por %p71, %p72
      %p74 = scmp.ne.s32.totalorder %s63, %s64
      %p75 = scmp.eq.s32.totalorder %s28, 0
      %p76 = por %p74, %p75
      %p77 = scmp.ne.s32.totalorder %s63, %s64
      %p78 = scmp.eq.s32.totalorder %s29, 1
      %p79 = por %p77, %p78
      %p81 = scmp.ne.s32.totalorder %s64, %s80
      %p82 = scmp.eq.s32.totalorder %s29, 0
      %p83 = por %p81, %p82
      %s84 = sadd.s32 %s31, %s32
      %p85 = scmp.lt.s32.totalorder %s84, 0
      %s86 = scalar_select %p85, %s84, 0
      %s87 = sadd.s32 %s45, %s41
      %p88 = scmp.lt.s32.totalorder %s87, 0
      %s89 = scalar_select %p88, %s87, 0
      %s90 = ssub.s32 %s30, %s49
      %s91 = ssub.s32 %s86, %s89
      %s92 = sor.u32 %s90, %s91
      %p93 = scmp.eq.s32.totalorder %s92, 0
      %s95 = sadd.s32 %s94, 1
      %s96 = scalar_select %p93, %s94, %s95
      %p99 = pneg %p93
      %p100 = scmp.eq.s32.totalorder %s23, 1
      %p101 = por %p99, %p100
      %p102 = scmp.ne.s32.totalorder %s94, %s97
      %p103 = scmp.eq.s32.totalorder %s23, 0
      %p104 = por %p102, %p103
      %p105 = scmp.ne.s32.totalorder %s94, %s97
      %p106 = scmp.eq.s32.totalorder %s28, 1
      %p107 = por %p105, %p106
      %p108 = scmp.ne.s32.totalorder %s97, %s98
      %p109 = scmp.eq.s32.totalorder %s28, 0
      %p110 = por %p108, %p109
      %p111 = scmp.ne.s32.totalorder %s97, %s98
      %p112 = scmp.eq.s32.totalorder %s29, 1
      %p113 = por %p111, %p112
      %p115 = scmp.ne.s32.totalorder %s98, %s114
      %p116 = scmp.eq.s32.totalorder %s29, 0
      %p117 = por %p115, %p116
      %s119 = sadd.s32 %s118, 1
      %p122 = scmp.eq.s32.totalorder %s23, 1
      %p123 = scmp.ne.s32.totalorder %s118, %s120
      %p124 = scmp.eq.s32.totalorder %s23, 0
      %p125 = por %p123, %p124
      %p126 = scmp.ne.s32.totalorder %s118, %s120
      %p127 = scmp.eq.s32.totalorder %s28, 1
      %p128 = por %p126, %p127
      %p129 = scmp.ne.s32.totalorder %s120, %s121
      %p130 = scmp.eq.s32.totalorder %s28, 0
      %p131 = por %p129, %p130
      %p132 = scmp.ne.s32.totalorder %s120, %s121
      %p133 = scmp.eq.s32.totalorder %s29, 1
      %p134 = por %p132, %p133
      %p136 = scmp.ne.s32.totalorder %s121, %s135
      %p137 = scmp.eq.s32.totalorder %s29, 0
      %p138 = por %p136, %p137
      %s139 = ssub.s32 %s30, %s49
      %s140 = ssub.s32 %s31, %s45
      %s141 = sor.u32 %s139, %s140
      %p142 = scmp.eq.s32.totalorder %s141, 0
      %s144 = sadd.s32 %s143, 1
      %s145 = scalar_select %p142, %s143, %s144
      %p148 = pneg %p142
      %p149 = scmp.eq.s32.totalorder %s23, 1
      %p150 = por %p148, %p149
      %p151 = scmp.ne.s32.totalorder %s143, %s146
      %p152 = scmp.eq.s32.totalorder %s23, 0
      %p153 = por %p151, %p152
      %p154 = scmp.ne.s32.totalorder %s143, %s146
      %p155 = scmp.eq.s32.totalorder %s28, 1
      %p156 = por %p154, %p155
      %p157 = scmp.ne.s32.totalorder %s146, %s147
      %p158 = scmp.eq.s32.totalorder %s28, 0
      %p159 = por %p157, %p158
      %p160 = scmp.ne.s32.totalorder %s146, %s147
      %p161 = scmp.eq.s32.totalorder %s29, 1
      %p162 = por %p160, %p161
      %p164 = scmp.ne.s32.totalorder %s147, %s163
      %p165 = scmp.eq.s32.totalorder %s29, 0
      %p166 = por %p164, %p165
      %s167 = ssub.s32 %s30, %s49
      %s168 = ssub.s32 %s31, %s45
      %s169 = sor.u32 %s167, %s168
      %p170 = scmp.eq.s32.totalorder %s169, 0
      %s172 = sadd.s32 %s171, 1
      %s173 = scalar_select %p170, %s171, %s172
      %p176 = pneg %p170
      %p177 = scmp.eq.s32.totalorder %s23, 1
      %p178 = por %p176, %p177
      %p179 = scmp.ne.s32.totalorder %s171, %s174
      %p180 = scmp.eq.s32.totalorder %s23, 0
      %p181 = por %p179, %p180
      %p182 = scmp.ne.s32.totalorder %s171, %s174
      %p183 = scmp.eq.s32.totalorder %s28, 1
      %p184 = por %p182, %p183
      %p185 = scmp.ne.s32.totalorder %s174, %s175
      %p186 = scmp.eq.s32.totalorder %s28, 0
      %p187 = por %p185, %p186
      %p188 = scmp.ne.s32.totalorder %s174, %s175
      %p189 = scmp.eq.s32.totalorder %s29, 1
      %p190 = por %p188, %p189
      %p192 = scmp.ne.s32.totalorder %s175, %s191
      %p193 = scmp.eq.s32.totalorder %s29, 0
      %p194 = por %p192, %p193
      %p195 = scmp.le.s32.totalorder 1, %s23
      %p196 = scmp.lt.s32.totalorder %s23, 3
      %p197 = pnand %p195, %p196
      %p198 = pneg %p197
      // Predicated region
      $region9: #{tpu_custom_call.1} parent=5 // pred_check
        _
      $region10: #{tpu_custom_call.1} parent=5 // pred_check_branch
        %200 = sbr.rel (%p197) target = $region12
      $region11: #{tpu_custom_call.1} parent=5 // pred_region
        %s201 = ssub.s32 %s23, 1
        // Predicated region
        $region13: #{tpu_custom_call.1} parent=11 // pred_check
          %p202 = pneg %p131
        $region14: #{tpu_custom_call.1} parent=11 // pred_check_branch
          %204 = sbr.rel (%p202) target = $region16
        $region15: #{tpu_custom_call.1} parent=11 // pred_region
          %s206 = ssub.s32 128, 128
          %207 = vsyncadd [#allocation6], %s206
          %s209 = sshll.u32 [#allocation7], 4
          %s210 = int_to_ptr.vmem [resolvable:$true] %s209
          %212 = dma.hbm_to_vmem [thread:$0]  %s2, 128, %s210, [#allocation6]
        $region16: #{tpu_custom_call.1} parent=11 // pred_fallthru
          _
      $region12: #{tpu_custom_call.1} parent=5 // pred_fallthru
        _
      %p213 = scmp.lt.s32.totalorder %s23, 2
      // Predicated region
      $region17: #{tpu_custom_call.1} parent=5 // pred_check
        %p214 = pneg %p213
      $region18: #{tpu_custom_call.1} parent=5 // pred_check_branch
        %216 = sbr.rel (%p214) target = $region20
      $region19: #{tpu_custom_call.1} parent=5 // pred_region
        // Predicated region
        $region21: #{tpu_custom_call.1} parent=19 // pred_check
          %p217 = pneg %p70
        $region22: #{tpu_custom_call.1} parent=19 // pred_check_branch
          %219 = sbr.rel (%p217) target = $region24
        $region23: #{tpu_custom_call.1} parent=19 // pred_region
          %s220 = sand.u32 %s60, 1
          %s221 = scalar_lea.sflag [#allocation3], %s220
          %s222 = sand.u32 %s60, 1
          %s223 = smul.addr %s222, 64
          %s224 = scalar_lea.vmem [#allocation2], %s223
          %s225 = sadd.s32 %s31, %s32
          %p226 = scmp.lt.s32.totalorder %s225, 0
          %s227 = scalar_select %p226, %s225, 0
          %s228 = smul.u32 2, %s227
          %s230 = ssub.s32 1024, 1024
          %231 = vsyncadd %s221, %s230
          %s232 = smul.addr %s30, 8
          %s233 = sadd.s32 %s228, %s232
          %s234 = smul.addr %s233, 128
          %s235 = scalar_lea.hbm %s0, %s234
          %s236 = sshll.u32 %s224, 4
          %s237 = int_to_ptr.vmem [resolvable:$true] %s236
          %242 = dma.hbm_to_vmem [thread:$0]  %s235, 1024, %s237, %s221, 256, 256, 16
        $region24: #{tpu_custom_call.1} parent=19 // pred_fallthru
          _
        // Predicated region
        $region25: #{tpu_custom_call.1} parent=19 // pred_check
          %p243 = pneg %p104
        $region26: #{tpu_custom_call.1} parent=19 // pred_check_branch
          %245 = sbr.rel (%p243) target = $region28
        $region27: #{tpu_custom_call.1} parent=19 // pred_region
          %s246 = sand.u32 %s23, 1
          %s247 = scalar_lea.sflag [#allocation6], %s246
          %s248 = sand.u32 %s94, 1
          %s249 = smul.addr %s248, 2
          %s250 = scalar_lea.vmem [#allocation5], %s249
          %s251 = sadd.s32 %s31, %s32
          %p252 = scmp.lt.s32.totalorder %s251, 0
          %s253 = scalar_select %p252, %s251, 0
          %s254 = smul.u32 2, %s253
          %s256 = ssub.s32 32, 32
          %257 = vsyncadd %s247, %s256
          %s258 = smul.addr %s30, 2
          %s259 = sadd.s32 %s254, %s258
          %s260 = smul.addr %s259, 16
          %s261 = scalar_lea.hbm %s1, %s260
          %s263 = sshll.u32 %s250, 4
          %s264 = int_to_ptr.vmem [resolvable:$true] %s263
          %266 = dma.hbm_to_vmem [thread:$0]  %s261, 32, %s264, %s247
        $region28: #{tpu_custom_call.1} parent=19 // pred_fallthru
          _
      $region20: #{tpu_custom_call.1} parent=5 // pred_fallthru
        _
      %p267 = scmp.le.s32.totalorder 1, %s23
      %p268 = scmp.lt.s32.totalorder %s23, 3
      %p269 = pnand %p267, %p268
      %p270 = pneg %p269
      // Predicated region
      $region29: #{tpu_custom_call.1} parent=5 // pred_check
        _
      $region30: #{tpu_custom_call.1} parent=5 // pred_check_branch
        %272 = sbr.rel (%p269) target = $region32
      $region31: #{tpu_custom_call.1} parent=5 // pred_region
        %s273 = ssub.s32 %s23, 1
        %s274 = sand.u32 %s63, 1
        %s275 = scalar_lea.sflag [#allocation3], %s274
        %s276 = sand.u32 %s63, 1
        %s277 = smul.addr %s276, 64
        %s278 = scalar_lea.vmem [#allocation2], %s277
        // Predicated region
        $region33: #{tpu_custom_call.1} parent=31 // pred_check
          %p279 = pneg %p76
        $region34: #{tpu_custom_call.1} parent=31 // pred_check_branch
          %281 = sbr.rel (%p279) target = $region36
        $region35: #{tpu_custom_call.1} parent=31 // pred_region
          %282 = dma.done %s275, 1024
        $region36: #{tpu_custom_call.1} parent=31 // pred_fallthru
          _
        %s283 = sand.u32 %s28, 1
        %s284 = scalar_lea.sflag [#allocation6], %s283
        %s285 = sand.u32 %s97, 1
        %s286 = smul.addr %s285, 2
        %s287 = scalar_lea.vmem [#allocation5], %s286
        // Predicated region
        $region37: #{tpu_custom_call.1} parent=31 // pred_check
          %p288 = pneg %p110
        $region38: #{tpu_custom_call.1} parent=31 // pred_check_branch
          %290 = sbr.rel (%p288) target = $region40
        $region39: #{tpu_custom_call.1} parent=31 // pred_region
          %291 = dma.done %s284, 32
        $region40: #{tpu_custom_call.1} parent=31 // pred_fallthru
          _
        // Predicated region
        $region41: #{tpu_custom_call.1} parent=31 // pred_check
          %p292 = pneg %p131
        $region42: #{tpu_custom_call.1} parent=31 // pred_check_branch
          %294 = sbr.rel (%p292) target = $region44
        $region43: #{tpu_custom_call.1} parent=31 // pred_region
          %295 = dma.done [#allocation6], 128
        $region44: #{tpu_custom_call.1} parent=31 // pred_fallthru
          _
        %s296 = sand.u32 %s63, 1
        %s297 = scalar_lea.sflag [#allocation3], %s296
        %s298 = sand.u32 %s63, 1
        %s299 = smul.addr %s298, 64
        %s300 = scalar_lea.vmem [#allocation2], %s299
        %p301 = pneg %p76
        %p302 = pneg %p73
        %s303 = sand.u32 %s28, 1
        %s304 = scalar_lea.sflag [#allocation6], %s303
        %s305 = sand.u32 %s97, 1
        %s306 = smul.addr %s305, 2
        %s307 = scalar_lea.vmem [#allocation5], %s306
        %p308 = pneg %p110
        %p309 = pneg %p107
        %p310 = pneg %p131
        %p311 = pneg %p128
        %p312 = pneg %p159
        %p313 = pneg %p156
        %s314 = sand.u32 %s146, 1
        %s315 = scalar_lea.sflag [#allocation4], %s314
        %s316 = sand.u32 %s146, 1
        %s317 = smul.addr %s316, 2
        %s318 = scalar_lea.vmem [#allocation8], %s317
        %p319 = pneg %p187
        %p320 = pneg %p184
        %s321 = sand.u32 %s174, 1
        %s322 = scalar_lea.sflag [#allocation10], %s321
        %s323 = sand.u32 %s174, 1
        %s324 = smul.addr %s323, 2
        %s325 = scalar_lea.vmem [#allocation9], %s324
        %s326 = sadd.s32 %s34, %s35
        %p327 = scmp.lt.s32.totalorder %s326, 0
        %s328 = scalar_select %p327, %s326, 0
        %s329 = smul.u32 2, %s328
        %s330 = sadd.s32 %s34, %s35
        %p331 = scmp.lt.s32.totalorder %s330, 0
        %s332 = scalar_select %p331, %s330, 0
        %s333 = smul.u32 2, %s332
        %s334 = sadd.s32 %s34, %s35
        %p335 = scmp.eq.s32.totalorder %s35, 0
        // Predicated region
        $region45: #{tpu_custom_call.1} parent=31 // pred_check
          %p336 = pneg %p335
        $region46: #{tpu_custom_call.1} parent=31 // pred_check_branch
          %338 = sbr.rel (%p336) target = $region48
        $region47: #{tpu_custom_call.1} parent=31 // pred_region
          %v339 = vlaneseq
          %vm340 = vcmp.ge.s32.totalorder %v339, 0
          %vm341 = vcmp.lt.s32.totalorder %v339, 256
          %vm342 = vmand %vm340, %vm341
          %343 = vst.msk [vmem:[%s318] sm:$0x3] %vm342, 0.0
          %344 = vst.msk [vmem:[%s325] sm:$0x3] %vm342, 0.0
        $region48: #{tpu_custom_call.1} parent=31 // pred_fallthru
          _
        %v345 = vld [vmem:[%s278] sm:$0xff]
        %v346 = vld [vmem:[%s278 + $0x8] sm:$0xff]
        %v347 = vld [vmem:[%s278 + $0x10] sm:$0xff]
        %v348 = vld [vmem:[%s278 + $0x18] sm:$0xff]
        %v349 = vld [vmem:[%s278 + $0x20] sm:$0xff]
        %v350 = vld [vmem:[%s278 + $0x28] sm:$0xff]
        %v351 = vld [vmem:[%s278 + $0x30] sm:$0xff]
        %v352 = vld [vmem:[%s278 + $0x38] sm:$0xff]
        %v353 = vmul.f32 %v345, %v345
        %v354 = vmul.f32 %v346, %v346
        %v355 = vmul.f32 %v347, %v347
        %v356 = vmul.f32 %v348, %v348
        %v357 = vmul.f32 %v349, %v349
        %v358 = vmul.f32 %v350, %v350
        %v359 = vmul.f32 %v351, %v351
        %v360 = vmul.f32 %v352, %v352
        %v361 = vadd.f32 %v353, %v355
        %v362 = vadd.f32 %v361, %v357
        %v363 = vadd.f32 %v362, %v359
        %v364 = vrot.slane %v363, 4
        %v365 = vadd.f32 %v363, %v364
        %v366 = vrot.slane %v365, 2
        %v367 = vadd.f32 %v365, %v366
        %v368 = vrot.slane %v367, 1
        %v369 = vadd.f32 %v367, %v368
        %v370 = vadd.f32 %v354, %v356
        %v371 = vadd.f32 %v370, %v358
        %v372 = vadd.f32 %v371, %v360
        %v373 = vrot.slane %v372, 4
        %v374 = vadd.f32 %v372, %v373
        %v375 = vrot.slane %v374, 2
        %v376 = vadd.f32 %v374, %v375
        %v377 = vrot.slane %v376, 1
        %v378 = vadd.f32 %v376, %v377
        %v379 = vmax.f32 %v369, 1e-24
        %v380 = vmax.f32 %v378, 1e-24
        %v381 = vrsqrt.pop %v379
        %v382 = vrsqrt.pop %v380
        %v383 = vmul.f32 %v381, 0.01
        %v384 = vmul.f32 %v382, 0.01
        %v385 = vld [vmem:[#allocation7] sm:$0xff]
        %vm386 = vcmask 261120
        %v388 = vsel %vm386, %v385, 0
        %390 = vmatprep.subr.mxu0 0.0
        %391 = vmatpush1.msra.mxu0 0.0
        %392 = vmatprep.subr.mxu0 0.0
        %393 = vmatpush1.msra.mxu0 0.0
        %394 = vmatprep.subr.mxu0 0.0
        %395 = vmatpush1.msra.mxu0 0.0
        %396 = vmatprep.subr.mxu0 0.0
        %397 = vmatpush1.msra.mxu0 0.0
        %398 = vmatprep.subr.mxu0 0.0
        %399 = vmatpush1.msra.mxu0 0.0
        %400 = vmatprep.subr.mxu0 0.0
        %401 = vmatpush1.msra.mxu0 0.0
        %402 = vmatprep.subr.mxu0 0.0
        %403 = vmatpush1.msra.mxu0 0.0
        %404 = vmatprep.subr.mxu0 0.0
        %405 = vmatpush1.msra.mxu0 0.0
        %406 = vmatprep.subr.mxu0 0.0
        %407 = vmatpush1.msra.mxu0 0.0
        %408 = vmatprep.subr.mxu0 0.0
        %409 = vmatpush1.msra.mxu0 0.0
        %410 = vmatprep.subr.mxu0 0.0
        %411 = vmatpush1.msra.mxu0 0.0
        %412 = vmatprep.subr.mxu0 0.0
        %413 = vmatpush1.msra.mxu0 0.0
        %414 = vmatprep.subr.mxu0 %v352
        %415 = vmatpush1.msra.mxu0 %v351
        %416 = vmatprep.subr.mxu0 %v350
        %417 = vmatpush1.msra.mxu0 %v349
        %418 = vmatprep.subr.mxu0 %v348
        %419 = vmatpush1.msra.mxu0 %v347
        %420 = vmatprep.subr.mxu0 %v346
        %421 = vmatpush1.msra.mxu0 %v345
        %422 = vmatprep.subr.mxu0 0.0
        %423 = vmatpush2.msra.mxu0 0.0
        %424 = vmatprep.subr.mxu0 0.0
        %425 = vmatpush2.msra.mxu0 0.0
        %426 = vmatprep.subr.mxu0 0.0
        %427 = vmatpush2.msra.mxu0 0.0
        %428 = vmatprep.subr.mxu0 0.0
        %429 = vmatpush2.msra.mxu0 0.0
        %430 = vmatprep.subr.mxu0 0.0
        %431 = vmatpush2.msra.mxu0 0.0
        %432 = vmatprep.subr.mxu0 0.0
        %433 = vmatpush2.msra.mxu0 0.0
        %434 = vmatprep.subr.mxu0 0.0
        %435 = vmatpush2.msra.mxu0 0.0
        %436 = vmatprep.subr.mxu0 0.0
        %437 = vmatpush2.msra.mxu0 0.0
        %438 = vmatprep.subr.mxu0 0.0
        %439 = vmatpush2.msra.mxu0 0.0
        %440 = vmatprep.subr.mxu0 0.0
        %441 = vmatpush2.msra.mxu0 0.0
        %442 = vmatprep.subr.mxu0 0.0
        %443 = vmatpush2.msra.mxu0 0.0
        %444 = vmatprep.subr.mxu0 0.0
        %445 = vmatpush2.msra.mxu0 0.0
        %446 = vmatprep.subr.mxu0 0.0
        %447 = vmatpush2.msra.mxu0 0.0
        %448 = vmatprep.subr.mxu0 0.0
        %449 = vmatpush2.msra.mxu0 0.0
        %450 = vmatprep.subr.mxu0 0.0
        %451 = vmatpush2.msra.mxu0 0.0
        %452 = vmatprep.subr.mxu0 0.0
        %453 = vmatpush2.msra.mxu0 0.0
        %454 = vmatprep.mubr.f32.mxu0 0.0
        %455 = vmatmul.mubr.f32.gmra.mxu0 %v388
        %v456 = vpop.f32.mrf.mxu0
        %v457 = vadd.f32 0.0, %v456
        %v458 = vpop.f32.mrf.mxu0
        %v459 = vadd.f32 0.0, %v458
        %460 = vdwg.mxu0
        %v461 = vmul.f32 %v457, %v383
        %v462 = vmul.f32 %v459, %v384
        %v463 = vrot.slane %v461, 4
        %v464 = vmax.f32 %v461, %v463
        %v465 = vrot.slane %v464, 2
        %v466 = vmax.f32 %v464, %v465
        %v467 = vrot.slane %v466, 1
        %v468 = vmax.f32 %v466, %v467
        %v469 = vrot.slane %v462, 4
        %v470 = vmax.f32 %v462, %v469
        %v471 = vrot.slane %v470, 2
        %v472 = vmax.f32 %v470, %v471
        %v473 = vrot.slane %v472, 1
        %v474 = vmax.f32 %v472, %v473
        %v475 = vsub.f32 %v461, %v468
        %v476 = vsub.f32 %v462, %v474
        %v477 = vmul.f32 %v475, 1.442695
        %v478 = vpow.pop %v477
        %v479 = vmul.f32 %v476, 1.442695
        %v480 = vpow.pop %v479
        %v481 = vrot.slane %v478, 4
        %v482 = vadd.f32 %v478, %v481
        %v483 = vrot.slane %v482, 2
        %v484 = vadd.f32 %v482, %v483
        %v485 = vrot.slane %v484, 1
        %v486 = vadd.f32 %v484, %v485
        %v487 = vrot.slane %v480, 4
        %v488 = vadd.f32 %v480, %v487
        %v489 = vrot.slane %v488, 2
        %v490 = vadd.f32 %v488, %v489
        %v491 = vrot.slane %v490, 1
        %v492 = vadd.f32 %v490, %v491
        %v493 = vlog2.pop %v486
        %v494 = vmul.f32 %v493, 0.6931472
        %v495 = vlog2.pop %v492
        %v496 = vmul.f32 %v495, 0.6931472
        %v497 = vadd.f32 %v468, %v494
        %v498 = vadd.f32 %v474, %v496
        %v499 = vld [vmem:[%s287] sm:$0x3]
        %v500 = vlaneseq
        %v501 = vshrl.u32 %v500, 7
        %v502 = vlaneseq
        %v503 = vshrl.u32 %v502, 7
        %v504 = vsub.s32 0, %v503
        %v505 = vrot.slane %v499, %v504
        %v506 = vlaneseq
        %v507 = vshrl.u32 %v506, 7
        %v508 = vsub.s32 1, %v507
        %v509 = vrot.slane %v499, %v508
        %vm510 = vcmp.eq.s32.totalorder %v501, %v505
        %vm511 = vcmp.eq.s32.totalorder %v501, %v509
        %v512 = vsel %vm510, %v461, 0.0
        %v513 = vsel %vm511, %v462, 0.0
        %v514 = vrot.slane %v512, 4
        %v515 = vadd.f32 %v512, %v514
        %v516 = vrot.slane %v515, 2
        %v517 = vadd.f32 %v515, %v516
        %v518 = vrot.slane %v517, 1
        %v519 = vadd.f32 %v517, %v518
        %v520 = vrot.slane %v513, 4
        %v521 = vadd.f32 %v513, %v520
        %v522 = vrot.slane %v521, 2
        %v523 = vadd.f32 %v521, %v522
        %v524 = vrot.slane %v523, 1
        %v525 = vadd.f32 %v523, %v524
        %v526 = vsub.f32 %v497, %v519
        %v527 = vsub.f32 %v498, %v525
        %vm528 = vcmp.ne.s32.totalorder %v499, 255
        %p529 = scmp.lt.s32.totalorder %s334, 0
        // Predicated region
        $region49: #{tpu_custom_call.1} parent=31 // pred_check
          %p530 = pneg %p529
        $region50: #{tpu_custom_call.1} parent=31 // pred_check_branch
          %532 = sbr.rel (%p530) target = $region52
        $region51: #{tpu_custom_call.1} parent=31 // pred_region
          %v533 = vld [vmem:[%s318] sm:$0x3]
          %v536 = vcombine.low %v526, %v527
          %v538 = vunpack.c.l.s4 1966171168
          %v539 = vunpack.c.0.s8 %v538
          %v540 = vlaneseq
          %v541 = vshrl.u32 %v540, 7
          %v542 = vsub.s32 %v539, %v541
          %v543 = vrot.slane %v536, %v542
          %v545 = vunpack.c.l.s4 1966171168
          %v546 = vunpack.c.0.s8 %v545
          %v547 = vlaneseq
          %v548 = vshrl.u32 %v547, 7
          %v549 = vsub.s32 %v546, %v548
          %v550 = vrot.slane %v543, %v549
          %v552 = vsel %vm528, %v550, 0.0
          %v553 = vadd.f32 %v533, %v552
          %v554 = vlaneseq
          %vm555 = vcmp.ge.s32.totalorder %v554, 0
          %vm556 = vcmp.lt.s32.totalorder %v554, 256
          %vm557 = vmand %vm555, %vm556
          %558 = vst.msk [vmem:[%s318] sm:$0x3] %vm557, %v553
          %v559 = vld [vmem:[%s325] sm:$0x3]
          %v560 = vsel %vm528, 1, 0
          %v561 = vcvt.s32.f32 %v560
          %v562 = vadd.f32 %v559, %v561
          %563 = vst.msk [vmem:[%s325] sm:$0x3] %vm557, %v562
        $region52: #{tpu_custom_call.1} parent=31 // pred_fallthru
          _
        %p564 = scmp.ge.s32.totalorder %s334, 0
        // Predicated region
        $region53: #{tpu_custom_call.1} parent=31 // pred_check
          %p565 = pneg %p564
        $region54: #{tpu_custom_call.1} parent=31 // pred_check_branch
          %567 = sbr.rel (%p565) target = $region56
        $region55: #{tpu_custom_call.1} parent=31 // pred_region
          %s568 = smul.u32 %s334, 256
          %v569 = vlaneseq
          %v570 = vand.u32 %v569, 127
          %v571 = vadd.s32 %v570, 128
          %v572 = vstv %s568
          %v573 = vadd.s32 %v572, %v570
          %v574 = vadd.s32 %v572, %v571
          %vm575 = vcmp.lt.s32.totalorder %v573, 256
          %vm576 = vcmp.lt.s32.totalorder %v574, 256
          %v577 = vsel %vm575, 1, 0
          %v578 = vsel %vm576, 1, 0
          %v579 = vcombine.low %v577, %v578
          %v581 = vunpack.c.l.s4 1966171168
          %v582 = vunpack.c.0.s8 %v581
          %v583 = vlaneseq
          %v584 = vshrl.u32 %v583, 7
          %v585 = vsub.s32 %v582, %v584
          %v586 = vrot.slane %v579, %v585
          %v588 = vunpack.c.l.s4 1966171168
          %v589 = vunpack.c.0.s8 %v588
          %v590 = vlaneseq
          %v591 = vshrl.u32 %v590, 7
          %v592 = vsub.s32 %v589, %v591
          %v593 = vrot.slane %v586, %v592
          %vm594 = vcmp.ne.s32.totalorder %v593, 0
          %vm595 = vmand %vm528, %vm594
          %v596 = vld [vmem:[%s318] sm:$0x3]
          %v599 = vcombine.low %v526, %v527
          %v601 = vunpack.c.l.s4 1966171168
          %v602 = vunpack.c.0.s8 %v601
          %v603 = vlaneseq
          %v604 = vshrl.u32 %v603, 7
          %v605 = vsub.s32 %v602, %v604
          %v606 = vrot.slane %v599, %v605
          %v608 = vunpack.c.l.s4 1966171168
          %v609 = vunpack.c.0.s8 %v608
          %v610 = vlaneseq
          %v611 = vshrl.u32 %v610, 7
          %v612 = vsub.s32 %v609, %v611
          %v613 = vrot.slane %v606, %v612
          %v615 = vsel %vm595, %v613, 0.0
          %v616 = vadd.f32 %v596, %v615
          %v617 = vlaneseq
          %vm618 = vcmp.ge.s32.totalorder %v617, 0
          %vm619 = vcmp.lt.s32.totalorder %v617, 256
          %vm620 = vmand %vm618, %vm619
          %621 = vst.msk [vmem:[%s318] sm:$0x3] %vm620, %v616
          %v622 = vld [vmem:[%s325] sm:$0x3]
          %v623 = vsel %vm595, 1, 0
          %v624 = vcvt.s32.f32 %v623
          %v625 = vadd.f32 %v622, %v624
          %626 = vst.msk [vmem:[%s325] sm:$0x3] %vm620, %v625
        $region56: #{tpu_custom_call.1} parent=31 // pred_fallthru
          _
        %s627 = sand.u32 %s146, 1
        %s628 = scalar_lea.sflag [#allocation4], %s627
        %s629 = sand.u32 %s146, 1
        %s630 = smul.addr %s629, 2
        %s631 = scalar_lea.vmem [#allocation8], %s630
        %s632 = sand.u32 %s174, 1
        %s633 = scalar_lea.sflag [#allocation10], %s632
        %s634 = sand.u32 %s174, 1
        %s635 = smul.addr %s634, 2
        %s636 = scalar_lea.vmem [#allocation9], %s635
        // Predicated region
        $region57: #{tpu_custom_call.1} parent=31 // pred_check
          %p637 = pneg %p156
        $region58: #{tpu_custom_call.1} parent=31 // pred_check_branch
          %639 = sbr.rel (%p637) target = $region60
        $region59: #{tpu_custom_call.1} parent=31 // pred_region
          %s641 = ssub.s32 32, 32
          %642 = vsyncadd %s628, %s641
          %s643 = smul.addr %s34, 2
          %s644 = smul.addr %s33, 2
          %s645 = sadd.s32 %s643, %s644
          %s646 = smul.addr %s645, 16
          %s647 = scalar_lea.hbm %s3, %s646
          %s649 = sshll.u32 %s631, 4
          %s650 = int_to_ptr.vmem [resolvable:$true] %s649
          %652 = dma.vmem_to_hbm [thread:$0]  %s650, 32, %s647, %s628
        $region60: #{tpu_custom_call.1} parent=31 // pred_fallthru
          _
        // Predicated region
        $region61: #{tpu_custom_call.1} parent=31 // pred_check
          %p653 = pneg %p184
        $region62: #{tpu_custom_call.1} parent=31 // pred_check_branch
          %655 = sbr.rel (%p653) target = $region64
        $region63: #{tpu_custom_call.1} parent=31 // pred_region
          %s657 = ssub.s32 32, 32
          %658 = vsyncadd %s633, %s657
          %s659 = smul.addr %s34, 2
          %s660 = smul.addr %s33, 2
          %s661 = sadd.s32 %s659, %s660
          %s662 = smul.addr %s661, 16
          %s663 = scalar_lea.hbm %s4, %s662
          %s665 = sshll.u32 %s636, 4
          %s666 = int_to_ptr.vmem [resolvable:$true] %s665
          %668 = dma.vmem_to_hbm [thread:$0]  %s666, 32, %s663, %s633
        $region64: #{tpu_custom_call.1} parent=31 // pred_fallthru
          _
      $region32: #{tpu_custom_call.1} parent=5 // pred_fallthru
        _
      %p669 = scmp.le.s32.totalorder 2, %s23
      // Predicated region
      $region65: #{tpu_custom_call.1} parent=5 // pred_check
        %p670 = pneg %p669
      $region66: #{tpu_custom_call.1} parent=5 // pred_check_branch
        %672 = sbr.rel (%p670) target = $region68
      $region67: #{tpu_custom_call.1} parent=5 // pred_region
        %s673 = ssub.s32 %s23, 2
        // Predicated region
        $region69: #{tpu_custom_call.1} parent=67 // pred_check
          %p674 = pneg %p162
        $region70: #{tpu_custom_call.1} parent=67 // pred_check_branch
          %676 = sbr.rel (%p674) target = $region72
        $region71: #{tpu_custom_call.1} parent=67 // pred_region
          %s677 = sand.u32 %s147, 1
          %s678 = scalar_lea.sflag [#allocation4], %s677
          %s679 = sand.u32 %s147, 1
          %s680 = smul.addr %s679, 2
          %s681 = scalar_lea.vmem [#allocation8], %s680
          %682 = dma.done %s678, 32
        $region72: #{tpu_custom_call.1} parent=67 // pred_fallthru
          _
        // Predicated region
        $region73: #{tpu_custom_call.1} parent=67 // pred_check
          %p683 = pneg %p190
        $region74: #{tpu_custom_call.1} parent=67 // pred_check_branch
          %685 = sbr.rel (%p683) target = $region76
        $region75: #{tpu_custom_call.1} parent=67 // pred_region
          %s686 = sand.u32 %s175, 1
          %s687 = scalar_lea.sflag [#allocation10], %s686
          %s688 = sand.u32 %s175, 1
          %s689 = smul.addr %s688, 2
          %s690 = scalar_lea.vmem [#allocation9], %s689
          %691 = dma.done %s687, 32
        $region76: #{tpu_custom_call.1} parent=67 // pred_fallthru
          _
      $region68: #{tpu_custom_call.1} parent=5 // pred_fallthru
        _
    $region6: #{tpu_custom_call.1} parent=1 // loop_footer
      %s27 = sadd.s32 1, %s23
    $region7: #{tpu_custom_call.1} parent=1 // loop_footer_branch
      %22 = sbr.rel target = $region3
    $region8: #{tpu_custom_call.1} parent=1 // loop_exit
      _
    %692 = vsyncpa [#allocation3], 1
    %s693 = scalar_lea.sflag [#allocation3], 1
    %694 = vsyncpa %s693, 1
    %695 = vsyncpa [#allocation6], 1
    %s696 = scalar_lea.sflag [#allocation6], 1
    %697 = vsyncpa %s696, 1
    %698 = vsyncpa [#allocation4], 1
    %s699 = scalar_lea.sflag [#allocation4], 1
    %700 = vsyncpa %s699, 1
    %701 = vsyncpa [#allocation10], 1
    %s702 = scalar_lea.sflag [#allocation10], 1
    %703 = vsyncpa %s702, 1

</llo_original>
